<compile_context>
chip_gen: v5e
topology: v5e:2x2
jax: 0.10.0
libtpu: 0.0.40
codegen_flags: <defaults>
</compile_context>

<pallas_src>
import jax
import jax.numpy as jnp
from jax.experimental import pallas as pl
from jax.experimental.pallas import tpu as pltpu


def _emission_kernel(logprobs_ref, x_ref, logw_ref, logp_ref, ll_ref):
    f = logprobs_ref.shape[1]           # dim_observable
    tn = x_ref.shape[1]                 # node tile (lane axis)

    # --- one-hot tile built on-chip, node axis on lanes: (F, TN) -------------
    ids = jax.lax.broadcasted_iota(jnp.int32, (f, tn), 0)          # (F, TN)
    onehot = (ids == x_ref[...]).astype(jnp.float32)               # (F, TN)

    # --- exact gather of per-component log-probs via MXU matmul --------------
    # (C, F) @ (F, TN) -> (C, TN); exact because each column of onehot selects
    # exactly one column of log_probs (log_probs pre-clamped, so no 0*(-inf)).
    logp = jnp.dot(logprobs_ref[...], onehot,
                   preferred_element_type=jnp.float32)             # (C, TN)
    logp_ref[...] = logp                                           # lane-dense store

    # --- stable mixture log-likelihood: logsumexp over C (sublane axis) ------
    s = logw_ref[...] + logp                                       # (C, TN)
    m = jnp.max(s, axis=0, keepdims=True)                          # (1, TN)
    ll_ref[...] = m + jnp.log(jnp.sum(jnp.exp(s - m), axis=0, keepdims=True))


def gspn_emission_forward(x, mixture_weights, theta, *, tile_n=8192):
    """x: (N,) int categories; mixture_weights: (N, C) probs; theta: (C, F) logits.

    Returns (probs (C,F), log_p (N,C), ll (N,)).
    """
    N = x.shape[0]
    C, F = theta.shape

    # Large lane-dense node tiles; kernel is HBM-bound so bigger is better up
    # to a few MB of VMEM.  Keep >= 2 grid steps when N allows it (v7x has two
    # TensorCores and the N axis is marked "parallel").
    tile_n = min(tile_n, N)
    if tile_n == N and N % 256 == 0:
        tile_n = N // 2
    assert N % tile_n == 0, "N must be divisible by tile_n"
    assert tile_n == N or tile_n % 128 == 0, "tile_n must be N or a multiple of 128"

    # --- grid-invariant glue (tiny, C x F): component parameters -------------
    log_probs = jax.nn.log_softmax(theta.astype(jnp.float32), axis=-1)    # (C, F)
    probs = jnp.exp(log_probs)                                            # (C, F)
    log_probs_clamped = jnp.maximum(log_probs, jnp.float32(-1e30))        # no -inf

    # --- per-node inputs, lane-dense orientation ------------------------------
    x_row = x.astype(jnp.int32).reshape(1, N)                             # (1, N)
    log_w = jnp.log(jnp.maximum(mixture_weights.astype(jnp.float32),
                                jnp.float32(1e-30))).T                    # (C, N)

    logp_cn, ll_row = pl.pallas_call(
        _emission_kernel,
        out_shape=(
            jax.ShapeDtypeStruct((C, N), jnp.float32),
            jax.ShapeDtypeStruct((1, N), jnp.float32),
        ),
        grid_spec=pltpu.PrefetchScalarGridSpec(
            num_scalar_prefetch=0,
            grid=(N // tile_n,),
            in_specs=[
                pl.BlockSpec((C, F), lambda i: (0, 0)),         # clamped log_probs (shared, tiny)
                pl.BlockSpec((1, tile_n), lambda i: (0, i)),    # x tile (int32 categories, lane-dense)
                pl.BlockSpec((C, tile_n), lambda i: (0, i)),    # log mixture weights tile
            ],
            out_specs=[
                pl.BlockSpec((C, tile_n), lambda i: (0, i)),    # per-component log-lik (lane-dense)
                pl.BlockSpec((1, tile_n), lambda i: (0, i)),    # per-node log-lik (lane-dense)
            ],
        ),
        compiler_params=pltpu.CompilerParams(
            dimension_semantics=("parallel",)),                 # node tiles independent
    )(log_probs_clamped, x_row, log_w)

    # tiny XLA transpose back to the module's (N, C) convention
    return probs, logp_cn.T, ll_row[0]


def _reference(x, mixture_weights, theta):
    log_probs = jax.nn.log_softmax(theta, axis=-1)             # (C, F)
    probs = jnp.exp(log_probs)
    log_p = log_probs.T[x, :]                                  # (N, C)
    ll = jax.scipy.special.logsumexp(jnp.log(mixture_weights) + log_p, axis=-1)
    return probs, log_p, ll


if __name__ == "__main__":
    # Module hyper-parameters (small, consistent with the module's __init__)
    dim_observable = 16      # F: number of categories
    num_mixtures = 8         # C
    num_hidden_neurons = 32  # stored by the base class; unused by this emission
    N = 64                   # number of nodes (samples)

    key = jax.random.PRNGKey(0)
    k_theta, k_x, k_w = jax.random.split(key, 3)

    # Deterministic parameter init (synthetic; no checkpoint load)
    theta = 0.1 * jax.random.normal(k_theta, (num_mixtures, dim_observable),
                                    dtype=jnp.float32)

    # Inputs
    x = jax.random.randint(k_x, (N,), 0, dim_observable, dtype=jnp.int32)
    w_logits = jax.random.normal(k_w, (N, num_mixtures), dtype=jnp.float32)
    mixture_weights = jax.nn.softmax(w_logits, axis=-1)

    probs, log_p, ll = gspn_emission_forward(x, mixture_weights, theta)
    jax.block_until_ready((probs, log_p, ll))

    # sanity check vs. pure-JAX reference
    probs_r, log_p_r, ll_r = _reference(x, mixture_weights, theta)
    assert probs.shape == (num_mixtures, dim_observable)
    assert log_p.shape == (N, num_mixtures)
    assert ll.shape == (N,)
    assert jnp.allclose(probs, probs_r, atol=1e-5, rtol=1e-5)
    assert jnp.allclose(log_p, log_p_r, atol=1e-5, rtol=1e-5)
    assert jnp.allclose(ll, ll_r, atol=1e-5, rtol=1e-5)

    print("KERNEL_OK")
</pallas_src>

<mosaic_0001>
module attributes {stable_mosaic.version = 11 : i64} {
  func.func @_emission_kernel(%arg0: i32, %arg1: memref<8x16xf32, #tpu.memory_space<vmem>>, %arg2: memref<1x64xi32, #tpu.memory_space<vmem>>, %arg3: memref<8x64xf32, #tpu.memory_space<vmem>>, %arg4: memref<8x64xf32, #tpu.memory_space<vmem>>, %arg5: memref<1x64xf32, #tpu.memory_space<vmem>>) attributes {dimension_semantics = [#tpu.dimension_semantics<parallel>], iteration_bounds = array<i64: 1>, scalar_prefetch = 0 : i64, scratch_operands = 0 : i64, tpu.core_type = #tpu.core_type<tc>, window_params = [{pipeline_mode = #tpu.pipeline_mode<synchronous>, transform_indices = @transform_0, window_bounds = array<i64: 8, 16>}, {transform_indices = @transform_1, window_bounds = array<i64: 1, 64>}, {transform_indices = @transform_2, window_bounds = array<i64: 8, 64>}, {transform_indices = @transform_3, window_bounds = array<i64: 8, 64>}, {transform_indices = @transform_4, window_bounds = array<i64: 1, 64>}]} {
    %0 = tpu.iota {dimensions = array<i32: 0>} : vector<16x64xi32>
    %c0 = arith.constant 0 : index
    %c0_0 = arith.constant 0 : index
    %1 = vector.load %arg2[%c0, %c0_0] : memref<1x64xi32, #tpu.memory_space<vmem>>, vector<1x64xi32>
    %2 = vector.broadcast %1 : vector<1x64xi32> to vector<16x64xi32>
    %3 = arith.cmpi eq, %0, %2 : vector<16x64xi32>
    %4 = arith.extui %3 : vector<16x64xi1> to vector<16x64xi32>
    %5 = arith.sitofp %4 : vector<16x64xi32> to vector<16x64xf32>
    %c0_1 = arith.constant 0 : index
    %c0_2 = arith.constant 0 : index
    %6 = vector.load %arg1[%c0_1, %c0_2] : memref<8x16xf32, #tpu.memory_space<vmem>>, vector<8x16xf32>
    %cst = arith.constant dense<0.000000e+00> : vector<8x64xf32>
    %7 = tpu.matmul %6, %5, %cst {dimension_numbers = #tpu.dot_dimension_numbers<[1], [0], [0], [1], [0, 0, 1, 1], [], []>} : vector<8x16xf32>, vector<16x64xf32>, vector<8x64xf32> -> vector<8x64xf32>
    %c0_3 = arith.constant 0 : index
    %c0_4 = arith.constant 0 : index
    %8 = vector.load %arg4[%c0_3, %c0_4] : memref<8x64xf32, #tpu.memory_space<vmem>>, vector<8x64xf32>
    tpu.vector_store %arg4[%c0_3, %c0_4], %7 {strides = array<i32>} : memref<8x64xf32, #tpu.memory_space<vmem>>, vector<8x64xf32>,
    %c0_5 = arith.constant 0 : index
    %c0_6 = arith.constant 0 : index
    %9 = vector.load %arg3[%c0_5, %c0_6] : memref<8x64xf32, #tpu.memory_space<vmem>>, vector<8x64xf32>
    %10 = arith.addf %9, %7 : vector<8x64xf32>
    %cst_7 = arith.constant dense<0xFF800000> : vector<64xf32>
    %11 = vector.multi_reduction <maximumf>, %10, %cst_7 [0] : vector<8x64xf32> to vector<64xf32>
    %12 = vector.shape_cast %11 : vector<64xf32> to vector<1x64xf32>
    %13 = vector.broadcast %12 : vector<1x64xf32> to vector<8x64xf32>
    %14 = arith.subf %10, %13 : vector<8x64xf32>
    %15 = math.exp %14 : vector<8x64xf32>
    %cst_8 = arith.constant dense<0.000000e+00> : vector<64xf32>
    %16 = vector.multi_reduction <add>, %15, %cst_8 [0] : vector<8x64xf32> to vector<64xf32>
    %17 = vector.shape_cast %16 : vector<64xf32> to vector<1x64xf32>
    %18 = math.log %17 : vector<1x64xf32>
    %19 = arith.addf %12, %18 : vector<1x64xf32>
    %c0_9 = arith.constant 0 : index
    %c0_10 = arith.constant 0 : index
    %20 = vector.load %arg5[%c0_9, %c0_10] : memref<1x64xf32, #tpu.memory_space<vmem>>, vector<1x64xf32>
    tpu.vector_store %arg5[%c0_9, %c0_10], %19 {strides = array<i32>} : memref<1x64xf32, #tpu.memory_space<vmem>>, vector<1x64xf32>,
    return
  }
  func.func @transform_0(%arg0: i32) -> (i32, i32) {
    %c0_i32 = arith.constant 0 : i32
    %c0_i32_0 = arith.constant 0 : i32
    %c0_i32_1 = arith.constant 0 : i32
    return %c0_i32, %c0_i32_0 : i32, i32
  }
  func.func @transform_1(%arg0: i32) -> (i32, i32) {
    %c0_i32 = arith.constant 0 : i32
    %c0_i32_0 = arith.constant 0 : i32
    return %c0_i32, %arg0 : i32, i32
  }
  func.func @transform_2(%arg0: i32) -> (i32, i32) {
    %c0_i32 = arith.constant 0 : i32
    %c0_i32_0 = arith.constant 0 : i32
    return %c0_i32, %arg0 : i32, i32
  }
  func.func @transform_3(%arg0: i32) -> (i32, i32) {
    %c0_i32 = arith.constant 0 : i32
    %c0_i32_0 = arith.constant 0 : i32
    return %c0_i32, %arg0 : i32, i32
  }
  func.func @transform_4(%arg0: i32) -> (i32, i32) {
    %c0_i32 = arith.constant 0 : i32
    %c0_i32_0 = arith.constant 0 : i32
    return %c0_i32, %arg0 : i32, i32
  }
}

</mosaic_0001>

<llo_original>
// kernel: tpu_custom_call.1
$region0: #{tpu_custom_call.1}
  #allocation0 [shape = 'u32[]', space=smem, size = 0x4, offset = 0x4, fixed_abs, tag = 'smem constant byte address 0x4 - core index']
  #allocation1 [shape = 'u32[72,128]{1,0:T(1,128)}', space=vmem, size = 0x9000, scoped, tag = 'internal scratch']
  %s0 = inlined_call_operand.hbm [shape: f32[8,16], index: 0, kind: input, shape index: {}]
  %s1 = inlined_call_operand.hbm [shape: s32[1,64], index: 1, kind: input, shape index: {}]
  %s2 = inlined_call_operand.hbm [shape: f32[8,64], index: 2, kind: input, shape index: {}]
  %s3 = inlined_call_operand.hbm [shape: f32[8,64], index: 3, kind: output, shape index: {0}]
  %s4 = inlined_call_operand.hbm [shape: f32[1,64], index: 4, kind: output, shape index: {1}]
  %5 = xla_tuple %s3, %s4
  %s6 = sld [smem:[#allocation0]]
  $region42: #{tpu_custom_call.1} parent=0
    _
  %s8 = ssub.s32 1, %s6
  %s9 = scalar_select 0, %s8, %s6
  $region1: #{tpu_custom_call.1} parent=0
    #allocation2 [shape = 'u8[4096]{0}', space=vmem, size = 0x1000, scoped, tag = 'input window, operand 0, single buffered']
    #allocation3 [shape = 's32[1]{0}', space=sflag, size = 0x4, scoped, tag = 'scoped memory for tpu_custom_call.1']
    #allocation4 [shape = 's32[1]{0}', space=sflag, size = 0x4, scoped, tag = 'scoped memory for tpu_custom_call.1']
    #allocation5 [shape = 'u8[512]{0}', space=vmem, size = 0x400, scoped, tag = 'input window, operand 1, single buffered']
    #allocation6 [shape = 's32[1]{0}', space=sflag, size = 0x4, scoped, tag = 'scoped memory for tpu_custom_call.1']
    #allocation7 [shape = 'u8[4096]{0}', space=vmem, size = 0x1000, scoped, tag = 'input window, operand 2, single buffered']
    #allocation8 [shape = 'u8[4096]{0}', space=vmem, size = 0x1000, scoped, tag = 'output window, operand 0, single buffered']
    #allocation9 [shape = 'u8[512]{0}', space=vmem, size = 0x400, scoped, tag = 'output window, operand 1, single buffered']
    #allocation10 [shape = 's32[1]{0}', space=sflag, size = 0x4, scoped, tag = 'scoped memory for tpu_custom_call.1']
    %10 = vsyncpa [#allocation3], 0
    %11 = vsyncpa [#allocation6], 0
    %12 = vsyncpa [#allocation4], 0
    %13 = vsyncpa [#allocation10], 0
    // Predicated region
    $region2: #{tpu_custom_call.1} parent=1 // pred_check
      _
    $region3: #{tpu_custom_call.1} parent=1 // pred_check_branch
      %15 = sbr.rel (0) target = $region5
    $region4: #{tpu_custom_call.1} parent=1 // pred_region
      %17 = vsyncadd [#allocation3], 0
      %s19 = sshll.u32 %s0, 4
      %s20 = int_to_ptr.hbm [resolvable:$true] %s19
      %s21 = sshll.u32 [#allocation2], 4
      %s22 = int_to_ptr.vmem [resolvable:$true] %s21
      %24 = dma.hbm_to_vmem [thread:$0]  %s20, 128, %s22, [#allocation3]
    $region5: #{tpu_custom_call.1} parent=1 // pred_fallthru
      _
    // Predicated region
    $region6: #{tpu_custom_call.1} parent=1 // pred_check
      _
    $region7: #{tpu_custom_call.1} parent=1 // pred_check_branch
      %26 = sbr.rel (0) target = $region9
    $region8: #{tpu_custom_call.1} parent=1 // pred_region
      %28 = vsyncadd [#allocation6], 0
      %s30 = sshll.u32 %s1, 4
      %s31 = int_to_ptr.hbm [resolvable:$true] %s30
      %s32 = sshll.u32 [#allocation5], 4
      %s33 = int_to_ptr.vmem [resolvable:$true] %s32
      %35 = dma.hbm_to_vmem [thread:$0]  %s31, 16, %s33, [#allocation6]
    $region9: #{tpu_custom_call.1} parent=1 // pred_fallthru
      _
    // Predicated region
    $region10: #{tpu_custom_call.1} parent=1 // pred_check
      _
    $region11: #{tpu_custom_call.1} parent=1 // pred_check_branch
      %37 = sbr.rel (0) target = $region13
    $region12: #{tpu_custom_call.1} parent=1 // pred_region
      %39 = vsyncadd [#allocation6], 0
      %s41 = sshll.u32 %s2, 4
      %s42 = int_to_ptr.hbm [resolvable:$true] %s41
      %s43 = sshll.u32 [#allocation7], 4
      %s44 = int_to_ptr.vmem [resolvable:$true] %s43
      %46 = dma.hbm_to_vmem [thread:$0]  %s42, 128, %s44, [#allocation6]
    $region13: #{tpu_custom_call.1} parent=1 // pred_fallthru
      _
    // Predicated region
    $region14: #{tpu_custom_call.1} parent=1 // pred_check
      _
    $region15: #{tpu_custom_call.1} parent=1 // pred_check_branch
      %48 = sbr.rel (0) target = $region17
    $region16: #{tpu_custom_call.1} parent=1 // pred_region
      %50 = dma.done [#allocation3], 128
    $region17: #{tpu_custom_call.1} parent=1 // pred_fallthru
      _
    // Predicated region
    $region18: #{tpu_custom_call.1} parent=1 // pred_check
      _
    $region19: #{tpu_custom_call.1} parent=1 // pred_check_branch
      %52 = sbr.rel (0) target = $region21
    $region20: #{tpu_custom_call.1} parent=1 // pred_region
      %54 = dma.done [#allocation6], 16
    $region21: #{tpu_custom_call.1} parent=1 // pred_fallthru
      _
    // Predicated region
    $region22: #{tpu_custom_call.1} parent=1 // pred_check
      _
    $region23: #{tpu_custom_call.1} parent=1 // pred_check_branch
      %56 = sbr.rel (0) target = $region25
    $region24: #{tpu_custom_call.1} parent=1 // pred_region
      %58 = dma.done [#allocation6], 128
    $region25: #{tpu_custom_call.1} parent=1 // pred_fallthru
      _
    %v59 = vlaneseq
    %v60 = vshrl.u32 %v59, 7
    %v61 = vadd.s32 %v60, 8
    %v62 = vld [vmem:[#allocation5] sm:$0x1]
    %v63 = vperm.slane %v62, 0
    %vm64 = vcmp.eq.s32.totalorder %v60, %v63
    %vm65 = vcmp.eq.s32.totalorder %v61, %v63
    %v66 = vsel %vm64, 1, 0
    %v67 = vsel %vm65, 1, 0
    %v68 = vcvt.s32.f32 %v66
    %v69 = vcvt.s32.f32 %v67
    %v70 = vld [vmem:[#allocation2] sm:$0xff]
    %vm71 = vcmask 130048
    %v73 = vsel %vm71, %v70, 0
    %75 = vmatpush.msra.mxu0 0.0
    %76 = vmatpush.msra.mxu0 0.0
    %77 = vmatpush.msra.mxu0 0.0
    %78 = vmatpush.msra.mxu0 0.0
    %79 = vmatpush.msra.mxu0 0.0
    %80 = vmatpush.msra.mxu0 0.0
    %81 = vmatpush.msra.mxu0 0.0
    %82 = vmatpush.msra.mxu0 0.0
    %83 = vmatpush.msra.mxu0 0.0
    %84 = vmatpush.msra.mxu0 0.0
    %85 = vmatpush.msra.mxu0 0.0
    %86 = vmatpush.msra.mxu0 0.0
    %87 = vmatpush.msra.mxu0 0.0
    %88 = vmatpush.msra.mxu0 0.0
    %89 = vmatpush.msra.mxu0 %v69
    %90 = vmatpush.msra.mxu0 %v68
    %91 = vmatmul.f32.gmra.mxu0 %v73
    %v92 = vpop.f32.mrf.mxu0
    %v93 = vadd.f32 0.0, %v92
    %94 = vdwg.mxu0
    %vm95 = vcmask 523264
    %96 = vst.msk [vmem:[#allocation8] sm:$0xff] %vm95, %v93
    %v97 = vld [vmem:[#allocation7] sm:$0xff]
    %v98 = vadd.f32 %v97, %v93
    %v99 = vsel %vm95, %v98, -inf
    %v100 = vrot.slane %v99, 4
    %v101 = vmax.f32 %v99, %v100
    %v102 = vrot.slane %v101, 2
    %v103 = vmax.f32 %v101, %v102
    %v104 = vrot.slane %v103, 1
    %v105 = vmax.f32 %v103, %v104
    %v106 = vsub.f32 %v98, %v105
    %v107 = vmul.f32 %v106, 1.442695
    %v108 = vpow.pop %v107
    %v109 = vsel %vm95, %v108, 0.0
    %v110 = vrot.slane %v109, 4
    %v111 = vadd.f32 %v109, %v110
    %v112 = vrot.slane %v111, 2
    %v113 = vadd.f32 %v111, %v112
    %v114 = vrot.slane %v113, 1
    %v115 = vadd.f32 %v113, %v114
    %v116 = vlog2.pop %v115
    %v117 = vmul.f32 %v116, 0.6931472
    %v118 = vadd.f32 %v105, %v117
    %vm119 = vcmask 516096
    %120 = vst.msk [vmem:[#allocation9] sm:$0x1] %vm119, %v118
    // Predicated region
    $region26: #{tpu_custom_call.1} parent=1 // pred_check
      _
    $region27: #{tpu_custom_call.1} parent=1 // pred_check_branch
      %122 = sbr.rel (0) target = $region29
    $region28: #{tpu_custom_call.1} parent=1 // pred_region
      %124 = vsyncadd [#allocation4], 0
      %s126 = sshll.u32 [#allocation8], 4
      %s127 = int_to_ptr.vmem [resolvable:$true] %s126
      %s128 = sshll.u32 %s3, 4
      %s129 = int_to_ptr.hbm [resolvable:$true] %s128
      %131 = dma.vmem_to_hbm [thread:$0]  %s127, 128, %s129, [#allocation4]
    $region29: #{tpu_custom_call.1} parent=1 // pred_fallthru
      _
    // Predicated region
    $region30: #{tpu_custom_call.1} parent=1 // pred_check
      _
    $region31: #{tpu_custom_call.1} parent=1 // pred_check_branch
      %133 = sbr.rel (0) target = $region33
    $region32: #{tpu_custom_call.1} parent=1 // pred_region
      %135 = vsyncadd [#allocation10], 0
      %s137 = sshll.u32 [#allocation9], 4
      %s138 = int_to_ptr.vmem [resolvable:$true] %s137
      %s139 = sshll.u32 %s4, 4
      %s140 = int_to_ptr.hbm [resolvable:$true] %s139
      %142 = dma.vmem_to_hbm [thread:$0]  %s138, 16, %s140, [#allocation10]
    $region33: #{tpu_custom_call.1} parent=1 // pred_fallthru
      _
    // Predicated region
    $region34: #{tpu_custom_call.1} parent=1 // pred_check
      _
    $region35: #{tpu_custom_call.1} parent=1 // pred_check_branch
      %144 = sbr.rel (0) target = $region37
    $region36: #{tpu_custom_call.1} parent=1 // pred_region
      %146 = dma.done [#allocation4], 128
    $region37: #{tpu_custom_call.1} parent=1 // pred_fallthru
      _
    // Predicated region
    $region38: #{tpu_custom_call.1} parent=1 // pred_check
      _
    $region39: #{tpu_custom_call.1} parent=1 // pred_check_branch
      %148 = sbr.rel (0) target = $region41
    $region40: #{tpu_custom_call.1} parent=1 // pred_region
      %150 = dma.done [#allocation10], 16
    $region41: #{tpu_custom_call.1} parent=1 // pred_fallthru
      _
    %151 = vsyncpa [#allocation3], 1
    %152 = vsyncpa [#allocation6], 1
    %153 = vsyncpa [#allocation4], 1
    %154 = vsyncpa [#allocation10], 1

</llo_original>
